<compile_context>
chip_gen: v7x
topology: tpu7x:2x2x1
jax: 0.10.0
libtpu: 0.0.40
codegen_flags: <defaults>
</compile_context>

<pallas_src>
import math

import jax
import jax.numpy as jnp
from jax.experimental import pallas as pl
from jax.experimental.pallas import tpu as pltpu


def _vmem_capacity_bytes():
    """Physical VMEM per TensorCore; conservative fallback if query fails."""
    try:
        return int(pltpu.get_tpu_info().vmem_capacity_bytes)
    except Exception:
        return 64 << 20  # v7x per-core VMEM (the tightest generation)


def _largest_tile(n, cap, mult=8):
    """Largest multiple of `mult` <= min(cap, n) dividing n; if no divisor
    exists, fall back to the rounded cap (grid uses cdiv + masked edge block)."""
    cap = min(cap, n)
    if n <= mult:
        return n
    t = (cap // mult) * mult
    fallback = max(mult, t)
    while t >= mult:
        if n % t == 0:
            return t
        t -= mult
    return fallback


# --------------------------- Kernel A: support ---------------------------- #
def _support_kernel(feat_ref, w_ref, sup_ref):
    # feat_ref: (TR, F_in) in the caller dtype; cast in VMEM to compute dtype.
    # w_ref   : (F_in, F_out) compute dtype.  sup_ref: (TR, F_out) compute dtype.
    x = feat_ref[...].astype(w_ref.dtype)
    sup = jnp.dot(x, w_ref[...], preferred_element_type=jnp.float32)
    sup_ref[...] = sup.astype(sup_ref.dtype)


# ------------------------- Kernel B: aggregation -------------------------- #
def _aggregate_kernel(adj_ref, sup_ref, b_ref, out_ref):
    # adj_ref: (TB, TM, N) f32 tile -> cast to compute dtype in VMEM (no extra
    # HBM cast pass). sup_ref: (TB, N, F_out) compute dtype. b_ref: (1, F_out) f32.
    adj = adj_ref[...].astype(sup_ref.dtype)
    out = jnp.einsum("bmn,bnk->bmk", adj, sup_ref[...],
                     preferred_element_type=jnp.float32)
    out_ref[...] = (out + b_ref[...]).astype(out_ref.dtype)


def graph_conv_layer(feature, adj, weight, bias=None, *,
                     compute_dtype=jnp.bfloat16):
    """feature: [B, N, F_in], adj: [B, N, N], weight: [F_in, F_out], bias: [F_out]."""
    B, N, F_in = feature.shape
    F_in_w, F_out = weight.shape
    assert F_in_w == F_in
    assert adj.shape == (B, N, N)
    out_dtype = feature.dtype

    vmem_cap = _vmem_capacity_bytes()
    adj_b = jnp.dtype(adj.dtype).itemsize
    sup_b = jnp.dtype(compute_dtype).itemsize
    out_b = jnp.dtype(out_dtype).itemsize

    if bias is None:
        bias = jnp.zeros((F_out,), jnp.float32)
    bias_2d = bias.astype(jnp.float32).reshape(1, F_out)
    weight_c = weight.astype(compute_dtype)  # tiny array; negligible traffic

    # ---- Kernel A: support = feature @ weight over flattened rows ----
    R = B * N
    feat_2d = feature.reshape(R, F_in)
    TR = _largest_tile(R, 1024)
    support_2d = pl.pallas_call(
        _support_kernel,
        out_shape=jax.ShapeDtypeStruct((R, F_out), compute_dtype),
        grid=(pl.cdiv(R, TR),),
        in_specs=[
            pl.BlockSpec((TR, F_in), lambda r: (r, 0)),
            pl.BlockSpec((F_in, F_out), lambda r: (0, 0)),
        ],
        out_specs=pl.BlockSpec((TR, F_out), lambda r: (r, 0)),
        compiler_params=pltpu.CompilerParams(
            dimension_semantics=("parallel",)),
    )(feat_2d, weight_c)
    support = support_2d.reshape(B, N, F_out)

    # ---- Kernel B tile planning (generation-aware via physical VMEM) ----
    budget = int(0.4 * vmem_cap)          # double-buffered working set budget
    bias_bytes = 2 * F_out * 4
    if N <= 256:
        # Small graphs: block multiple batches per step to amortize per-step
        # overhead; each step does one batched (TB, N, N) x (TB, N, F_out).
        TM = N
        per_batch = 2 * (N * N * adj_b + N * F_out * sup_b + N * F_out * out_b)
        TB = max(1, min(B, (budget - bias_bytes) // max(1, per_batch)))
        while TB > 1 and B % TB != 0:
            TB -= 1
    else:
        # Large graphs: one batch per step, stream (TM, N) adjacency row tiles.
        TB = 1
        fixed = 2 * N * F_out * sup_b + bias_bytes
        per_row = 2 * (N * adj_b + F_out * out_b)
        cap_rows = max(8, (budget - fixed) // max(1, per_row))
        TM = _largest_tile(N, min(cap_rows, 2048))

    grid = (pl.cdiv(B, TB), pl.cdiv(N, TM))

    footprint = (2 * TB * TM * N * adj_b          # adj tiles (double-buffered)
                 + 2 * TB * N * F_out * sup_b     # support blocks
                 + 2 * TB * TM * F_out * out_b    # output tiles
                 + bias_bytes)
    vmem_limit = int(max(32 << 20,
                         min(footprint + (8 << 20), int(0.85 * vmem_cap))))

    out = pl.pallas_call(
        _aggregate_kernel,
        out_shape=jax.ShapeDtypeStruct((B, N, F_out), out_dtype),
        grid=grid,
        in_specs=[
            pl.BlockSpec((TB, TM, N), lambda bt, rt: (bt, rt, 0)),      # adj f32
            pl.BlockSpec((TB, N, F_out), lambda bt, rt: (bt, 0, 0)),    # support
            pl.BlockSpec((1, F_out), lambda bt, rt: (0, 0)),            # bias
        ],
        out_specs=pl.BlockSpec((TB, TM, F_out), lambda bt, rt: (bt, rt, 0)),
        compiler_params=pltpu.CompilerParams(
            dimension_semantics=("parallel", "parallel"),
            vmem_limit_bytes=vmem_limit,
        ),
    )(adj, support, bias_2d)
    return out


def init_params(key, in_features, out_features):
    """Deterministic synthetic init matching the module's __init__ distributions."""
    k_w, k_b = jax.random.split(key)
    # xavier_uniform_: U(-a, a), a = sqrt(6 / (fan_in + fan_out))
    a = math.sqrt(6.0 / (in_features + out_features))
    weight = jax.random.uniform(k_w, (in_features, out_features),
                                jnp.float32, minval=-a, maxval=a)
    stdv = 1.0 / math.sqrt(out_features)
    bias = jax.random.uniform(k_b, (out_features,),
                              jnp.float32, minval=-stdv, maxval=stdv)
    return weight, bias


if __name__ == "__main__":
    key = jax.random.PRNGKey(0)
    k_feat, k_adj, k_param = jax.random.split(key, 3)

    B, N, F_in, F_out = 2, 16, 32, 32

    feature = jax.random.normal(k_feat, (B, N, F_in), jnp.float32)
    # Simple synthetic (row-normalized) adjacency.
    adj_raw = jax.random.uniform(k_adj, (B, N, N), jnp.float32)
    adj = adj_raw / jnp.sum(adj_raw, axis=-1, keepdims=True)

    weight, bias = init_params(k_param, F_in, F_out)

    # Pure-JAX f32 reference (module semantics).
    ref = jnp.matmul(adj, jnp.matmul(feature, weight)) + bias

    # 1) Exact-semantics run (f32 compute path) -> tight tolerance.
    out_f32 = graph_conv_layer(feature, adj, weight, bias,
                               compute_dtype=jnp.float32)
    out_f32 = jax.block_until_ready(out_f32)
    assert out_f32.shape == (B, N, F_out)
    assert jnp.allclose(out_f32, ref, atol=1e-5, rtol=1e-5)

    # 2) Default fast path (bf16 MXU inputs, f32 accumulation) -> bf16 tolerance.
    out_bf16 = graph_conv_layer(feature, adj, weight, bias)
    out_bf16 = jax.block_until_ready(out_bf16)
    assert out_bf16.shape == (B, N, F_out)
    assert jnp.allclose(out_bf16, ref, atol=5e-2, rtol=5e-2)

    print("KERNEL_OK")
</pallas_src>

<mosaic_0001>
module attributes {stable_mosaic.version = 11 : i64} {
  func.func @_support_kernel(%arg0: i32, %arg1: memref<32x32xf32, #tpu.memory_space<vmem>>, %arg2: memref<32x32xf32, #tpu.memory_space<vmem>>, %arg3: memref<32x32xf32, #tpu.memory_space<vmem>>) attributes {dimension_semantics = [#tpu.dimension_semantics<parallel>], iteration_bounds = array<i64: 1>, scalar_prefetch = 0 : i64, scratch_operands = 0 : i64, tpu.core_type = #tpu.core_type<tc>, window_params = [{transform_indices = @transform_0, window_bounds = array<i64: 32, 32>}, {pipeline_mode = #tpu.pipeline_mode<synchronous>, transform_indices = @transform_1, window_bounds = array<i64: 32, 32>}, {transform_indices = @transform_2, window_bounds = array<i64: 32, 32>}]} {
    %c0 = arith.constant 0 : index
    %c0_0 = arith.constant 0 : index
    %0 = vector.load %arg1[%c0, %c0_0] : memref<32x32xf32, #tpu.memory_space<vmem>>, vector<32x32xf32>
    %c0_1 = arith.constant 0 : index
    %c0_2 = arith.constant 0 : index
    %1 = vector.load %arg2[%c0_1, %c0_2] : memref<32x32xf32, #tpu.memory_space<vmem>>, vector<32x32xf32>
    %cst = arith.constant dense<0.000000e+00> : vector<32x32xf32>
    %2 = tpu.matmul %0, %1, %cst {dimension_numbers = #tpu.dot_dimension_numbers<[1], [0], [0], [1], [0, 0, 1, 1], [], []>} : vector<32x32xf32>, vector<32x32xf32>, vector<32x32xf32> -> vector<32x32xf32>
    %c0_3 = arith.constant 0 : index
    %c0_4 = arith.constant 0 : index
    %3 = vector.load %arg3[%c0_3, %c0_4] : memref<32x32xf32, #tpu.memory_space<vmem>>, vector<32x32xf32>
    tpu.vector_store %arg3[%c0_3, %c0_4], %2 {strides = array<i32>} : memref<32x32xf32, #tpu.memory_space<vmem>>, vector<32x32xf32>,
    return
  }
  func.func @transform_0(%arg0: i32) -> (i32, i32) {
    %c0_i32 = arith.constant 0 : i32
    %c0_i32_0 = arith.constant 0 : i32
    return %arg0, %c0_i32 : i32, i32
  }
  func.func @transform_1(%arg0: i32) -> (i32, i32) {
    %c0_i32 = arith.constant 0 : i32
    %c0_i32_0 = arith.constant 0 : i32
    %c0_i32_1 = arith.constant 0 : i32
    return %c0_i32, %c0_i32_0 : i32, i32
  }
  func.func @transform_2(%arg0: i32) -> (i32, i32) {
    %c0_i32 = arith.constant 0 : i32
    %c0_i32_0 = arith.constant 0 : i32
    return %arg0, %c0_i32 : i32, i32
  }
}

</mosaic_0001>

<llo_original>
// kernel: tpu_custom_call.1
$region0: #{tpu_custom_call.1}
  #allocation0 [shape = 'u32[]', space=smem, size = 0x4, offset = 0x4, fixed_abs, tag = 'smem constant byte address 0x4 - core index']
  #allocation1 [shape = 'u32[144,128]{1,0:T(1,128)}', space=vmem, size = 0x12000, scoped, tag = 'internal scratch']
  %s0 = inlined_call_operand.hbm [shape: f32[32,32], index: 0, kind: input, shape index: {}]
  %s1 = inlined_call_operand.hbm [shape: f32[32,32], index: 1, kind: input, shape index: {}]
  %s2 = inlined_call_operand.hbm [shape: f32[32,32], index: 2, kind: output, shape index: {}]
  %s3 = sld [smem:[#allocation0]]
  $region26: #{tpu_custom_call.1} parent=0
    _
  %s5 = ssub.s32 1, %s3
  %s6 = scalar_select 0, %s5, %s3
  $region1: #{tpu_custom_call.1} parent=0
    #allocation2 [shape = 'u8[16384]{0}', space=vmem, size = 0x4000, scoped, tag = 'input window, operand 0, single buffered']
    #allocation3 [shape = 's32[1]{0}', space=sflag, size = 0x4, scoped, tag = 'scoped memory for tpu_custom_call.1']
    #allocation4 [shape = 's32[1]{0}', space=sflag, size = 0x4, scoped, tag = 'scoped memory for tpu_custom_call.1']
    #allocation5 [shape = 'u8[16384]{0}', space=vmem, size = 0x4000, scoped, tag = 'input window, operand 1, single buffered']
    #allocation6 [shape = 's32[1]{0}', space=sflag, size = 0x4, scoped, tag = 'scoped memory for tpu_custom_call.1']
    #allocation7 [shape = 'u8[16384]{0}', space=vmem, size = 0x4000, scoped, tag = 'output window, operand 0, single buffered']
    %7 = vsyncpa [#allocation3], 0
    %8 = vsyncpa [#allocation6], 0
    %9 = vsyncpa [#allocation4], 0
    // Predicated region
    $region2: #{tpu_custom_call.1} parent=1 // pred_check
      _
    $region3: #{tpu_custom_call.1} parent=1 // pred_check_branch
      %11 = sbr.rel (0) target = $region5
    $region4: #{tpu_custom_call.1} parent=1 // pred_region
      %s13 = ssub.s32 512, 512
      %14 = vsyncadd [#allocation3], %s13
      %s15 = sshll.u32 [#allocation2], 4
      %s16 = int_to_ptr.vmem [resolvable:$true] %s15
      %21 = dma.hbm_to_vmem [thread:$0]  %s0, 512, %s16, [#allocation3], 128, 128, 8
    $region5: #{tpu_custom_call.1} parent=1 // pred_fallthru
      _
    // Predicated region
    $region6: #{tpu_custom_call.1} parent=1 // pred_check
      _
    $region7: #{tpu_custom_call.1} parent=1 // pred_check_branch
      %23 = sbr.rel (0) target = $region9
    $region8: #{tpu_custom_call.1} parent=1 // pred_region
      %s25 = ssub.s32 512, 512
      %26 = vsyncadd [#allocation6], %s25
      %s27 = sshll.u32 [#allocation5], 4
      %s28 = int_to_ptr.vmem [resolvable:$true] %s27
      %33 = dma.hbm_to_vmem [thread:$0]  %s1, 512, %s28, [#allocation6], 128, 128, 8
    $region9: #{tpu_custom_call.1} parent=1 // pred_fallthru
      _
    // Predicated region
    $region10: #{tpu_custom_call.1} parent=1 // pred_check
      _
    $region11: #{tpu_custom_call.1} parent=1 // pred_check_branch
      %35 = sbr.rel (0) target = $region13
    $region12: #{tpu_custom_call.1} parent=1 // pred_region
      %36 = dma.done [#allocation3], 512
    $region13: #{tpu_custom_call.1} parent=1 // pred_fallthru
      _
    // Predicated region
    $region14: #{tpu_custom_call.1} parent=1 // pred_check
      _
    $region15: #{tpu_custom_call.1} parent=1 // pred_check_branch
      %38 = sbr.rel (0) target = $region17
    $region16: #{tpu_custom_call.1} parent=1 // pred_region
      %39 = dma.done [#allocation6], 512
    $region17: #{tpu_custom_call.1} parent=1 // pred_fallthru
      _
    %v40 = vld [vmem:[#allocation2] sm:$0xff]
    %v41 = vld [vmem:[#allocation2 + $0x8] sm:$0xff]
    %v42 = vld [vmem:[#allocation2 + $0x10] sm:$0xff]
    %v43 = vld [vmem:[#allocation2 + $0x18] sm:$0xff]
    %v44 = vld [vmem:[#allocation5] sm:$0xff]
    %v45 = vld [vmem:[#allocation5 + $0x8] sm:$0xff]
    %v46 = vld [vmem:[#allocation5 + $0x10] sm:$0xff]
    %v47 = vld [vmem:[#allocation5 + $0x18] sm:$0xff]
    %vm48 = vcmask 261120
    %v50 = vsel %vm48, %v40, 0
    %v53 = vsel %vm48, %v41, 0
    %v56 = vsel %vm48, %v42, 0
    %v59 = vsel %vm48, %v43, 0
    %61 = vmatprep.subr.mxu0 0.0
    %62 = vmatpush1.msra.mxu0 %v44
    %63 = vmatprep.subr.mxu0 0.0
    %64 = vmatpush1.msra.mxu0 %v45
    %65 = vmatprep.subr.mxu0 0.0
    %66 = vmatpush1.msra.mxu0 %v46
    %67 = vmatprep.subr.mxu0 0.0
    %68 = vmatpush1.msra.mxu0 %v47
    %69 = vmatprep.subr.mxu0 0.0
    %70 = vmatpush1.msra.mxu0 0.0
    %71 = vmatprep.subr.mxu0 0.0
    %72 = vmatpush1.msra.mxu0 0.0
    %73 = vmatprep.subr.mxu0 0.0
    %74 = vmatpush1.msra.mxu0 0.0
    %75 = vmatprep.subr.mxu0 0.0
    %76 = vmatpush1.msra.mxu0 0.0
    %77 = vmatprep.subr.mxu0 0.0
    %78 = vmatpush1.msra.mxu0 0.0
    %79 = vmatprep.subr.mxu0 0.0
    %80 = vmatpush1.msra.mxu0 0.0
    %81 = vmatprep.subr.mxu0 0.0
    %82 = vmatpush1.msra.mxu0 0.0
    %83 = vmatprep.subr.mxu0 0.0
    %84 = vmatpush1.msra.mxu0 0.0
    %85 = vmatprep.subr.mxu0 0.0
    %86 = vmatpush1.msra.mxu0 0.0
    %87 = vmatprep.subr.mxu0 0.0
    %88 = vmatpush1.msra.mxu0 0.0
    %89 = vmatprep.subr.mxu0 0.0
    %90 = vmatpush1.msra.mxu0 0.0
    %91 = vmatprep.subr.mxu0 0.0
    %92 = vmatpush1.msra.mxu0 0.0
    %93 = vmatprep.subr.mxu0 0.0
    %94 = vmatpush1.msra.mxu0 0.0
    %95 = vmatprep.subr.mxu0 0.0
    %96 = vmatpush1.msra.mxu0 0.0
    %97 = vmatprep.subr.mxu0 0.0
    %98 = vmatpush1.msra.mxu0 0.0
    %99 = vmatprep.subr.mxu0 0.0
    %100 = vmatpush1.msra.mxu0 0.0
    %101 = vmatprep.subr.mxu0 0.0
    %102 = vmatpush1.msra.mxu0 0.0
    %103 = vmatprep.subr.mxu0 0.0
    %104 = vmatpush1.msra.mxu0 0.0
    %105 = vmatprep.subr.mxu0 0.0
    %106 = vmatpush1.msra.mxu0 0.0
    %107 = vmatprep.subr.mxu0 0.0
    %108 = vmatpush1.msra.mxu0 0.0
    %109 = vmatprep.subr.mxu0 0.0
    %110 = vmatpush1.msra.mxu0 0.0
    %111 = vmatprep.subr.mxu0 0.0
    %112 = vmatpush1.msra.mxu0 0.0
    %113 = vmatprep.subr.mxu0 0.0
    %114 = vmatpush1.msra.mxu0 0.0
    %115 = vmatprep.subr.mxu0 0.0
    %116 = vmatpush1.msra.mxu0 0.0
    %117 = vmatprep.subr.mxu0 0.0
    %118 = vmatpush1.msra.mxu0 0.0
    %119 = vmatprep.subr.mxu0 0.0
    %120 = vmatpush1.msra.mxu0 0.0
    %121 = vmatprep.subr.mxu0 0.0
    %122 = vmatpush1.msra.mxu0 0.0
    %123 = vmatprep.subr.mxu0 0.0
    %124 = vmatpush1.msra.mxu0 0.0
    %125 = vmatprep.mubr.f32.mxu0 0.0
    %126 = vmatmul.mubr.f32.gmra.mrb[0].mxu0 %v50
    %v127 = vpop.f32.mrb[0].mxu0
    %v128 = vadd.f32 0.0, %v127
    %v129 = vpop.f32.mrb[0].mxu0
    %130 = vmatprep.mubr.f32.mxu0 0.0
    %131 = vmatmul.mubr.f32.gmra.mrb[0].mxu0 %v53
    %v132 = vpop.f32.mrb[0].mxu0
    %v133 = vadd.f32 0.0, %v132
    %v134 = vpop.f32.mrb[0].mxu0
    %135 = vmatprep.mubr.f32.mxu0 0.0
    %136 = vmatmul.mubr.f32.gmra.mrb[0].mxu0 %v56
    %v137 = vpop.f32.mrb[0].mxu0
    %v138 = vadd.f32 0.0, %v137
    %v139 = vpop.f32.mrb[0].mxu0
    %140 = vmatprep.mubr.f32.mxu0 0.0
    %141 = vmatmul.mubr.f32.gmra.mrb[0].mxu0 %v59
    %v142 = vpop.f32.mrb[0].mxu0
    %v143 = vadd.f32 0.0, %v142
    %v144 = vpop.f32.mrb[0].mxu0
    %145 = vdwg.mxu0
    %146 = vst.msk [vmem:[#allocation7] sm:$0xff] %vm48, %v128
    %147 = vst.msk [vmem:[#allocation7 + $0x8] sm:$0xff] %vm48, %v133
    %148 = vst.msk [vmem:[#allocation7 + $0x10] sm:$0xff] %vm48, %v138
    %149 = vst.msk [vmem:[#allocation7 + $0x18] sm:$0xff] %vm48, %v143
    // Predicated region
    $region18: #{tpu_custom_call.1} parent=1 // pred_check
      _
    $region19: #{tpu_custom_call.1} parent=1 // pred_check_branch
      %151 = sbr.rel (0) target = $region21
    $region20: #{tpu_custom_call.1} parent=1 // pred_region
      %s153 = ssub.s32 512, 512
      %154 = vsyncadd [#allocation4], %s153
      %s155 = sshll.u32 [#allocation7], 4
      %s156 = int_to_ptr.vmem [resolvable:$true] %s155
      %161 = dma.vmem_to_hbm [thread:$0]  %s156, 512, %s2, [#allocation4], 128, 128, 8
    $region21: #{tpu_custom_call.1} parent=1 // pred_fallthru
      _
    // Predicated region
    $region22: #{tpu_custom_call.1} parent=1 // pred_check
      _
    $region23: #{tpu_custom_call.1} parent=1 // pred_check_branch
      %163 = sbr.rel (0) target = $region25
    $region24: #{tpu_custom_call.1} parent=1 // pred_region
      %164 = dma.done [#allocation4], 512
    $region25: #{tpu_custom_call.1} parent=1 // pred_fallthru
      _
    %165 = vsyncpa [#allocation3], 1
    %166 = vsyncpa [#allocation6], 1
    %167 = vsyncpa [#allocation4], 1

</llo_original>
